<compile_context>
chip_gen: v7x
topology: tpu7x:2x2x1
jax: 0.10.0
libtpu: 0.0.40
codegen_flags: <defaults>
</compile_context>

<pallas_src>
import functools

import jax
import jax.numpy as jnp
from jax.experimental import pallas as pl
from jax.experimental.pallas import tpu as pltpu

LANE = 128
BF16_SUBLANE = 16   # bf16 tiling: second-to-last block dim must be a multiple of 16


def _round_up(x, m):
    return (x + m - 1) // m * m


def _infer_kernel(img_ref, w_ref, feat_ref, norm_ref, acc_ref, *, inv_hw):
    """One (batch-tile, hw-chunk) grid step.

    img_ref:  (BT, C, TK, 128)  raw bf16 pixels (0..255), zero-padded
    w_ref:    (C, D_pad)        f32 projection weight (backbone stand-in)
    feat_ref: (BT, D_pad)       L2-normalized embeddings (written at last k)
    norm_ref: (BT, 1)           embedding L2 norms        (written at last k)
    acc_ref:  (BT, C, 128)      f32 per-lane pixel-sum accumulator (scratch)
    """
    k = pl.program_id(1)

    @pl.when(k == 0)
    def _():
        acc_ref[...] = jnp.zeros_like(acc_ref)

    # Streaming phase: accumulate raw pixel sums in f32 (affine applied after pooling).
    x = img_ref[...].astype(jnp.float32)              # (BT, C, TK, 128)
    acc_ref[...] += jnp.sum(x, axis=2)                # (BT, C, 128)

    @pl.when(k == pl.num_programs(1) - 1)
    def _():
        sums = jnp.sum(acc_ref[...], axis=-1)         # (BT, C) final cross-lane reduce
        # Global average pool + hoisted read_img affine: (mean - 127.5) / 127.5.
        pooled = (sums * inv_hw - 127.5) * (1.0 / 127.5)
        w = w_ref[...]                                # (C, D_pad)
        # VPU broadcast-multiply-accumulate (K = C is tiny; keep it off the MXU).
        feats = pooled[:, 0:1] * w[0:1, :]            # (BT, D_pad)
        for c in range(1, w.shape[0]):
            feats = feats + pooled[:, c:c + 1] * w[c:c + 1, :]
        sq = jnp.sum(feats * feats, axis=-1, keepdims=True)   # (BT, 1)
        # Matches torch embeddings.div(norm): no epsilon (NaN iff features == 0).
        inv_norm = jax.lax.rsqrt(sq)                  # EUP slot, not a VALU divide
        feat_ref[...] = feats * inv_norm
        norm_ref[...] = jnp.sqrt(sq)


def infer_embeddings(image_nchw, w_proj, *, batch_tile=8, hw_chunk=64):
    """image_nchw: (B, C, H, W) raw pixel values (0..255); w_proj: (C, D) float32.

    Returns (embeddings (B, D), norms (B, 1)) as in InferenceModel.forward.
    """
    B, C, H, W = image_nchw.shape
    D = w_proj.shape[1]
    HW = H * W

    # Lane-dense image layout: (B, C, T, 128), HW zero-padded up to T*128
    # (zero padding is harmless: we sum raw pixels and divide by the true HW).
    T = pl.cdiv(HW, LANE)
    if T <= hw_chunk:
        tk = T                      # single chunk: full-dim block needs no alignment
    else:
        tk = _round_up(min(hw_chunk, T), BF16_SUBLANE)
    t_pad = _round_up(T, tk)

    bt = min(batch_tile, B)         # don't DMA padded batch rows when B is small
    b_pad = _round_up(B, bt)
    d_pad = _round_up(D, LANE)      # lane-dense (unmasked) embedding stores

    # bf16 image: 2x less HBM traffic than f32; integer pixel values are exact.
    # TODO(synk): uint8 input would halve HBM bytes again once unsigned->float
    # conversion on this path is confirmed in Mosaic.
    img = image_nchw.astype(jnp.bfloat16).reshape(B, C, HW)
    img = jnp.pad(img, ((0, b_pad - B), (0, 0), (0, t_pad * LANE - HW)))
    img = img.reshape(b_pad, C, t_pad, LANE)

    w = jnp.pad(w_proj.astype(jnp.float32), ((0, 0), (0, d_pad - D)))

    kernel = functools.partial(_infer_kernel, inv_hw=1.0 / float(HW))

    feats, norms = pl.pallas_call(
        kernel,
        out_shape=(
            jax.ShapeDtypeStruct((b_pad, d_pad), jnp.float32),
            jax.ShapeDtypeStruct((b_pad, 1), jnp.float32),
        ),
        grid_spec=pltpu.PrefetchScalarGridSpec(
            num_scalar_prefetch=0,
            grid=(b_pad // bt, t_pad // tk),
            in_specs=[
                pl.BlockSpec((bt, C, tk, LANE), lambda b, k: (b, 0, k, 0)),
                pl.BlockSpec((C, d_pad), lambda b, k: (0, 0)),   # resident weight
            ],
            out_specs=(
                pl.BlockSpec((bt, d_pad), lambda b, k: (b, 0)),
                pl.BlockSpec((bt, 1), lambda b, k: (b, 0)),
            ),
            scratch_shapes=[pltpu.VMEM((bt, C, LANE), jnp.float32)],
        ),
        # Batch tiles are independent ("parallel": shards across TCs on v7x);
        # the HW axis carries the accumulator ("arbitrary").
        # TODO(synk): for the B == 1 production shape on v7x, additionally split the
        # HW reduction across a leading parallel axis so both TensorCores stream.
        compiler_params=pltpu.CompilerParams(
            dimension_semantics=("parallel", "arbitrary"),
        ),
    )(img, w)
    return feats[:B, :D], norms[:B]


if __name__ == "__main__":
    key = jax.random.PRNGKey(0)
    k_img, k_w = jax.random.split(key)

    B, C, H, W, D = 2, 3, 64, 64, 64       # small demo; real model uses (1, 3, 224, 224)

    # Raw integer pixel values in [0, 255], as produced by an image decoder.
    image = jax.random.randint(k_img, (B, C, H, W), 0, 256, jnp.int32).astype(jnp.float32)
    w_proj = jax.random.normal(k_w, (C, D), jnp.float32) * 0.1

    # hw_chunk=16 -> two reduction steps along the HW grid axis in this small demo.
    feats, norms = infer_embeddings(image, w_proj, hw_chunk=16)
    feats = jax.block_until_ready(feats)
    norms = jax.block_until_ready(norms)

    # Pure-JAX reference of the module forward (read_img affine -> GAP+proj -> L2 norm).
    x = (image - 127.5) / 127.5
    pooled_ref = jnp.mean(x.reshape(B, C, H * W), axis=-1)
    feats_ref = pooled_ref @ w_proj
    norm_ref = jnp.linalg.norm(feats_ref, axis=1, keepdims=True)
    emb_ref = feats_ref / norm_ref

    assert feats.shape == (B, D) and norms.shape == (B, 1)
    assert bool(jnp.all(jnp.isfinite(feats)))
    assert bool(jnp.allclose(feats, emb_ref, atol=1e-4, rtol=1e-4))
    assert bool(jnp.allclose(norms, norm_ref, atol=1e-4, rtol=1e-4))
    assert bool(jnp.allclose(jnp.linalg.norm(feats, axis=1), jnp.ones((B,)), atol=1e-5))

    print("KERNEL_OK")
</pallas_src>

<mosaic_0001>
module attributes {stable_mosaic.version = 11 : i64} {
  func.func @_infer_kernel(%arg0: i32, %arg1: i32, %arg2: memref<2x3x16x128xbf16, #tpu.memory_space<vmem>>, %arg3: memref<3x128xf32, #tpu.memory_space<vmem>>, %arg4: memref<2x128xf32, #tpu.memory_space<vmem>>, %arg5: memref<2x1xf32, #tpu.memory_space<vmem>>, %arg6: memref<2x3x128xf32, #tpu.memory_space<vmem>>) attributes {dimension_semantics = [#tpu.dimension_semantics<parallel>, #tpu.dimension_semantics<arbitrary>], iteration_bounds = array<i64: 1, 2>, scalar_prefetch = 0 : i64, scratch_operands = 1 : i64, tpu.core_type = #tpu.core_type<tc>, window_params = [{transform_indices = @transform_0, window_bounds = array<i64: 2, 3, 16, 128>}, {pipeline_mode = #tpu.pipeline_mode<synchronous>, transform_indices = @transform_1, window_bounds = array<i64: 3, 128>}, {transform_indices = @transform_2, window_bounds = array<i64: 2, 128>}, {transform_indices = @transform_3, window_bounds = array<i64: 2, 1>}]} {
    %c0_i32 = arith.constant 0 : i32
    %0 = arith.cmpi eq, %arg1, %c0_i32 : i32
    %1 = arith.extui %0 : i1 to i32
    %c0_i32_0 = arith.constant 0 : i32
    %2 = arith.cmpi ne, %1, %c0_i32_0 : i32
    scf.if %2 {
      %cst_11 = arith.constant 0.000000e+00 : f32
      %12 = vector.broadcast %cst_11 : f32 to vector<2x3x128xf32>
      %c0_12 = arith.constant 0 : index
      %c0_13 = arith.constant 0 : index
      %c0_14 = arith.constant 0 : index
      %13 = vector.load %arg6[%c0_12, %c0_13, %c0_14] : memref<2x3x128xf32, #tpu.memory_space<vmem>>, vector<2x3x128xf32>
      tpu.vector_store %arg6[%c0_12, %c0_13, %c0_14], %12 {strides = array<i32>} : memref<2x3x128xf32, #tpu.memory_space<vmem>>, vector<2x3x128xf32>,
    } else {
    }
    %c0 = arith.constant 0 : index
    %c0_1 = arith.constant 0 : index
    %c0_2 = arith.constant 0 : index
    %c0_3 = arith.constant 0 : index
    %3 = vector.load %arg2[%c0, %c0_1, %c0_2, %c0_3] : memref<2x3x16x128xbf16, #tpu.memory_space<vmem>>, vector<2x3x16x128xbf16>
    %4 = arith.extf %3 : vector<2x3x16x128xbf16> to vector<2x3x16x128xf32>
    %c0_4 = arith.constant 0 : index
    %c0_5 = arith.constant 0 : index
    %c0_6 = arith.constant 0 : index
    %5 = vector.load %arg6[%c0_4, %c0_5, %c0_6] : memref<2x3x128xf32, #tpu.memory_space<vmem>>, vector<2x3x128xf32>
    %cst = arith.constant dense<0.000000e+00> : vector<2x3x128xf32>
    %6 = vector.multi_reduction <add>, %4, %cst [2] : vector<2x3x16x128xf32> to vector<2x3x128xf32>
    %7 = arith.addf %5, %6 : vector<2x3x128xf32>
    %c0_7 = arith.constant 0 : index
    %c0_8 = arith.constant 0 : index
    %c0_9 = arith.constant 0 : index
    %8 = vector.load %arg6[%c0_7, %c0_8, %c0_9] : memref<2x3x128xf32, #tpu.memory_space<vmem>>, vector<2x3x128xf32>
    tpu.vector_store %arg6[%c0_7, %c0_8, %c0_9], %7 {strides = array<i32>} : memref<2x3x128xf32, #tpu.memory_space<vmem>>, vector<2x3x128xf32>,
    %c1_i32 = arith.constant 1 : i32
    %9 = arith.cmpi eq, %arg1, %c1_i32 : i32
    %10 = arith.extui %9 : i1 to i32
    %c0_i32_10 = arith.constant 0 : i32
    %11 = arith.cmpi ne, %10, %c0_i32_10 : i32
    scf.if %11 {
      %c0_11 = arith.constant 0 : index
      %c0_12 = arith.constant 0 : index
      %c0_13 = arith.constant 0 : index
      %12 = vector.load %arg6[%c0_11, %c0_12, %c0_13] : memref<2x3x128xf32, #tpu.memory_space<vmem>>, vector<2x3x128xf32>
      %cst_14 = arith.constant dense<0.000000e+00> : vector<2x3xf32>
      %13 = vector.multi_reduction <add>, %12, %cst_14 [2] : vector<2x3x128xf32> to vector<2x3xf32>
      %cst_15 = arith.constant 2.44140625E-4 : f32
      %14 = vector.broadcast %cst_15 : f32 to vector<2x3xf32>
      %15 = arith.mulf %13, %14 : vector<2x3xf32>
      %cst_16 = arith.constant 1.275000e+02 : f32
      %16 = vector.broadcast %cst_16 : f32 to vector<2x3xf32>
      %17 = arith.subf %15, %16 : vector<2x3xf32>
      %cst_17 = arith.constant 0.00784313772 : f32
      %18 = vector.broadcast %cst_17 : f32 to vector<2x3xf32>
      %19 = arith.mulf %17, %18 : vector<2x3xf32>
      %c0_18 = arith.constant 0 : index
      %c0_19 = arith.constant 0 : index
      %20 = vector.load %arg3[%c0_18, %c0_19] : memref<3x128xf32, #tpu.memory_space<vmem>>, vector<3x128xf32>
      %21 = vector.extract_strided_slice %19 {offsets = [0, 0], sizes = [2, 1], strides = [1, 1]} : vector<2x3xf32> to vector<2x1xf32>
      %22 = vector.extract_strided_slice %20 {offsets = [0, 0], sizes = [1, 128], strides = [1, 1]} : vector<3x128xf32> to vector<1x128xf32>
      %23 = vector.broadcast %21 : vector<2x1xf32> to vector<2x128xf32>
      %24 = vector.broadcast %22 : vector<1x128xf32> to vector<2x128xf32>
      %25 = arith.mulf %23, %24 : vector<2x128xf32>
      %26 = vector.extract_strided_slice %19 {offsets = [0, 1], sizes = [2, 1], strides = [1, 1]} : vector<2x3xf32> to vector<2x1xf32>
      %27 = vector.extract_strided_slice %20 {offsets = [1, 0], sizes = [1, 128], strides = [1, 1]} : vector<3x128xf32> to vector<1x128xf32>
      %28 = vector.broadcast %26 : vector<2x1xf32> to vector<2x128xf32>
      %29 = vector.broadcast %27 : vector<1x128xf32> to vector<2x128xf32>
      %30 = arith.mulf %28, %29 : vector<2x128xf32>
      %31 = arith.addf %25, %30 : vector<2x128xf32>
      %32 = vector.extract_strided_slice %19 {offsets = [0, 2], sizes = [2, 1], strides = [1, 1]} : vector<2x3xf32> to vector<2x1xf32>
      %33 = vector.extract_strided_slice %20 {offsets = [2, 0], sizes = [1, 128], strides = [1, 1]} : vector<3x128xf32> to vector<1x128xf32>
      %34 = vector.broadcast %32 : vector<2x1xf32> to vector<2x128xf32>
      %35 = vector.broadcast %33 : vector<1x128xf32> to vector<2x128xf32>
      %36 = arith.mulf %34, %35 : vector<2x128xf32>
      %37 = arith.addf %31, %36 : vector<2x128xf32>
      %38 = arith.mulf %37, %37 : vector<2x128xf32>
      %cst_20 = arith.constant dense<0.000000e+00> : vector<2xf32>
      %39 = vector.multi_reduction <add>, %38, %cst_20 [1] : vector<2x128xf32> to vector<2xf32>
      %40 = vector.shape_cast %39 : vector<2xf32> to vector<2x1xf32>
      %41 = math.rsqrt %40 : vector<2x1xf32>
      %42 = vector.broadcast %41 : vector<2x1xf32> to vector<2x128xf32>
      %43 = arith.mulf %37, %42 : vector<2x128xf32>
      %c0_21 = arith.constant 0 : index
      %c0_22 = arith.constant 0 : index
      %44 = vector.load %arg4[%c0_21, %c0_22] : memref<2x128xf32, #tpu.memory_space<vmem>>, vector<2x128xf32>
      tpu.vector_store %arg4[%c0_21, %c0_22], %43 {strides = array<i32>} : memref<2x128xf32, #tpu.memory_space<vmem>>, vector<2x128xf32>,
      %45 = math.sqrt %40 : vector<2x1xf32>
      %c0_23 = arith.constant 0 : index
      %c0_24 = arith.constant 0 : index
      %46 = vector.load %arg5[%c0_23, %c0_24] : memref<2x1xf32, #tpu.memory_space<vmem>>, vector<2x1xf32>
      tpu.vector_store %arg5[%c0_23, %c0_24], %45 {strides = array<i32>} : memref<2x1xf32, #tpu.memory_space<vmem>>, vector<2x1xf32>,
    } else {
    }
    return
  }
  func.func @transform_0(%arg0: i32, %arg1: i32) -> (i32, i32, i32, i32) {
    %c0_i32 = arith.constant 0 : i32
    %c0_i32_0 = arith.constant 0 : i32
    %c0_i32_1 = arith.constant 0 : i32
    return %arg0, %c0_i32, %arg1, %c0_i32_0 : i32, i32, i32, i32
  }
  func.func @transform_1(%arg0: i32, %arg1: i32) -> (i32, i32) {
    %c0_i32 = arith.constant 0 : i32
    %c0_i32_0 = arith.constant 0 : i32
    %c0_i32_1 = arith.constant 0 : i32
    return %c0_i32, %c0_i32_0 : i32, i32
  }
  func.func @transform_2(%arg0: i32, %arg1: i32) -> (i32, i32) {
    %c0_i32 = arith.constant 0 : i32
    %c0_i32_0 = arith.constant 0 : i32
    return %arg0, %c0_i32 : i32, i32
  }
  func.func @transform_3(%arg0: i32, %arg1: i32) -> (i32, i32) {
    %c0_i32 = arith.constant 0 : i32
    %c0_i32_0 = arith.constant 0 : i32
    return %arg0, %c0_i32 : i32, i32
  }
}

</mosaic_0001>

<llo_original>
// kernel: tpu_custom_call.1
$region0: #{tpu_custom_call.1}
  #allocation0 [shape = 'u32[]', space=smem, size = 0x4, offset = 0x4, fixed_abs, tag = 'smem constant byte address 0x4 - core index']
  #allocation1 [shape = 'u32[144,128]{1,0:T(1,128)}', space=vmem, size = 0x12000, scoped, tag = 'internal scratch']
  #allocation2 [shape = 'f32[2,3,128]{2,1,0:T(4,128)}', space=vmem, size = 0x1000, scoped, tag = 'scratch operand']
  #allocation9 [shape = 's32[]', space=sflag, size = 0x4, offset = 0, fixed_abs, tag = 'sflag constant byte address 0x0 - dummy sync flag']
  %s0 = inlined_call_operand.hbm [shape: bf16[2,3,32,128], index: 0, kind: input, shape index: {}]
  %s1 = inlined_call_operand.hbm [shape: f32[3,128], index: 1, kind: input, shape index: {}]
  %s2 = inlined_call_operand.hbm [shape: f32[2,128], index: 2, kind: output, shape index: {0}]
  %s3 = inlined_call_operand.vmem [shape: f32[2,1], index: 3, kind: output, shape index: {1}]
  %4 = xla_tuple %s2, %s3
  %s5 = sld [smem:[#allocation0]]
  $region65: #{tpu_custom_call.1} parent=0
    _
  %s7 = ssub.s32 1, %s5
  %s8 = scalar_select 0, %s7, %s5
  $region1: #{tpu_custom_call.1} parent=0
    #allocation3 [shape = 'u8[49152]{0}', space=vmem, size = 0xc000, scoped, tag = 'input window, operand 0']
    #allocation4 [shape = 's32[2]{0}', space=sflag, size = 0x8, scoped, tag = 'scoped memory for tpu_custom_call.1']
    #allocation5 [shape = 's32[2]{0}', space=sflag, size = 0x8, scoped, tag = 'scoped memory for tpu_custom_call.1']
    #allocation6 [shape = 'u8[2048]{0}', space=vmem, size = 0x800, scoped, tag = 'input window, operand 1, single buffered']
    #allocation7 [shape = 's32[1]{0}', space=sflag, size = 0x4, scoped, tag = 'scoped memory for tpu_custom_call.1']
    #allocation8 [shape = 'u8[1024]{0}', space=vmem, size = 0x400, scoped, tag = 'output window, operand 0, single buffered']
    %9 = vsyncpa [#allocation4], 0
    %s10 = scalar_lea.sflag [#allocation4], 1
    %11 = vsyncpa %s10, 0
    %12 = vsyncpa [#allocation7], 0
    %13 = vsyncpa [#allocation5], 0
    loop: start=0, step=1, limit=4
    $region2: #{tpu_custom_call.1} parent=1 // loop_pre_header
      _
    $region3: #{tpu_custom_call.1} parent=1 // loop_header
      %s15 = sphi 0, %s19
      %p16 = scmp.ge.s32.totalorder %s15, 4
      %s22 = sphi 0, %s34
      %s23 = sphi 0, %s30
      %s24 = sphi 0, %s22
      %s25 = sphi 0, %s23
      %s26 = sphi 0, %s24
      %s27 = sphi 0, %s25
      %s39 = sphi 0, %s41
      %s42 = sphi 0, %s39
      %s43 = sphi 0, %s42
      %s59 = sphi 0, %s43
      %s63 = sphi 0, %s63
      %s65 = sphi 0, %s63
      %s66 = sphi 0, %s65
      %s80 = sphi 0, %s66
      %s86 = sphi 0, %s88
      %s89 = sphi 0, %s86
      %s90 = sphi 0, %s89
      %s106 = sphi 0, %s90
      %s112 = sphi 0, %s114
      %s115 = sphi 0, %s112
      %s116 = sphi 0, %s115
      %s132 = sphi 0, %s116
    $region4: #{tpu_custom_call.1} parent=1 // loop_header_branch
      %18 = sbr.rel (%p16) target = $region8
    $region5: #{tpu_custom_call.1} parent=1 // loop_body
      %s20 = ssub.s32 %s15, 1
      %s21 = ssub.s32 %s15, 2
      %s28 = sadd.s32 1, %s23
      %p29 = scmp.ge.s32.totalorder %s28, 2
      %s30 = scalar_select %p29, 0, %s28
      %s31 = sadd.s32 1, %s22
      %s32 = scalar_select %p29, %s31, %s22
      %p33 = scmp.ge.s32.totalorder %s32, 1
      %s34 = scalar_select %p33, 0, %s32
      %s35 = ssub.s32 %s22, %s34
      %s36 = ssub.s32 %s23, %s30
      %s37 = sor.u32 %s35, %s36
      %p38 = scmp.eq.s32.totalorder %s37, 0
      %s40 = sadd.s32 %s39, 1
      %s41 = scalar_select %p38, %s39, %s40
      %p44 = pneg %p38
      %p45 = scmp.eq.s32.totalorder %s15, 1
      %p46 = por %p44, %p45
      %p47 = scmp.ne.s32.totalorder %s39, %s42
      %p48 = scmp.eq.s32.totalorder %s15, 0
      %p49 = por %p47, %p48
      %p50 = scmp.ne.s32.totalorder %s39, %s42
      %p51 = scmp.eq.s32.totalorder %s20, 1
      %p52 = por %p50, %p51
      %p53 = scmp.ne.s32.totalorder %s42, %s43
      %p54 = scmp.eq.s32.totalorder %s20, 0
      %p55 = por %p53, %p54
      %p56 = scmp.ne.s32.totalorder %s42, %s43
      %p57 = scmp.eq.s32.totalorder %s21, 1
      %p58 = por %p56, %p57
      %p60 = scmp.ne.s32.totalorder %s43, %s59
      %p61 = scmp.eq.s32.totalorder %s21, 0
      %p62 = por %p60, %p61
      %s64 = sadd.s32 %s63, 1
      %p67 = scmp.eq.s32.totalorder %s15, 1
      %p68 = scmp.ne.s32.totalorder %s63, %s65
      %p69 = scmp.eq.s32.totalorder %s15, 0
      %p70 = por %p68, %p69
      %p71 = scmp.ne.s32.totalorder %s63, %s65
      %p72 = scmp.eq.s32.totalorder %s20, 1
      %p73 = por %p71, %p72
      %p74 = scmp.ne.s32.totalorder %s65, %s66
      %p75 = scmp.eq.s32.totalorder %s20, 0
      %p76 = por %p74, %p75
      %p77 = scmp.ne.s32.totalorder %s65, %s66
      %p78 = scmp.eq.s32.totalorder %s21, 1
      %p79 = por %p77, %p78
      %p81 = scmp.ne.s32.totalorder %s66, %s80
      %p82 = scmp.eq.s32.totalorder %s21, 0
      %p83 = por %p81, %p82
      %s84 = ssub.s32 %s22, %s34
      %p85 = scmp.eq.s32.totalorder %s84, 0
      %s87 = sadd.s32 %s86, 1
      %s88 = scalar_select %p85, %s86, %s87
      %p91 = pneg %p85
      %p92 = scmp.eq.s32.totalorder %s15, 1
      %p93 = por %p91, %p92
      %p94 = scmp.ne.s32.totalorder %s86, %s89
      %p95 = scmp.eq.s32.totalorder %s15, 0
      %p96 = por %p94, %p95
      %p97 = scmp.ne.s32.totalorder %s86, %s89
      %p98 = scmp.eq.s32.totalorder %s20, 1
      %p99 = por %p97, %p98
      %p100 = scmp.ne.s32.totalorder %s89, %s90
      %p101 = scmp.eq.s32.totalorder %s20, 0
      %p102 = por %p100, %p101
      %p103 = scmp.ne.s32.totalorder %s89, %s90
      %p104 = scmp.eq.s32.totalorder %s21, 1
      %p105 = por %p103, %p104
      %p107 = scmp.ne.s32.totalorder %s90, %s106
      %p108 = scmp.eq.s32.totalorder %s21, 0
      %p109 = por %p107, %p108
      %s110 = ssub.s32 %s22, %s34
      %p111 = scmp.eq.s32.totalorder %s110, 0
      %s113 = sadd.s32 %s112, 1
      %s114 = scalar_select %p111, %s112, %s113
      %p117 = pneg %p111
      %p118 = scmp.eq.s32.totalorder %s15, 1
      %p119 = por %p117, %p118
      %p120 = scmp.ne.s32.totalorder %s112, %s115
      %p121 = scmp.eq.s32.totalorder %s15, 0
      %p122 = por %p120, %p121
      %p123 = scmp.ne.s32.totalorder %s112, %s115
      %p124 = scmp.eq.s32.totalorder %s20, 1
      %p125 = por %p123, %p124
      %p126 = scmp.ne.s32.totalorder %s115, %s116
      %p127 = scmp.eq.s32.totalorder %s20, 0
      %p128 = por %p126, %p127
      %p129 = scmp.ne.s32.totalorder %s115, %s116
      %p130 = scmp.eq.s32.totalorder %s21, 1
      %p131 = por %p129, %p130
      %p133 = scmp.ne.s32.totalorder %s116, %s132
      %p134 = scmp.eq.s32.totalorder %s21, 0
      %p135 = por %p133, %p134
      %p136 = scmp.le.s32.totalorder 1, %s15
      %p137 = scmp.lt.s32.totalorder %s15, 3
      %p138 = pnand %p136, %p137
      %p139 = pneg %p138
      // Predicated region
      $region9: #{tpu_custom_call.1} parent=5 // pred_check
        _
      $region10: #{tpu_custom_call.1} parent=5 // pred_check_branch
        %141 = sbr.rel (%p138) target = $region12
      $region11: #{tpu_custom_call.1} parent=5 // pred_region
        %s142 = ssub.s32 %s15, 1
        // Predicated region
        $region13: #{tpu_custom_call.1} parent=11 // pred_check
          %p143 = pneg %p76
        $region14: #{tpu_custom_call.1} parent=11 // pred_check_branch
          %145 = sbr.rel (%p143) target = $region16
        $region15: #{tpu_custom_call.1} parent=11 // pred_region
          %s147 = ssub.s32 64, 64
          %148 = vsyncadd [#allocation7], %s147
          %s150 = sshll.u32 [#allocation6], 4
          %s151 = int_to_ptr.vmem [resolvable:$true] %s150
          %153 = dma.hbm_to_vmem [thread:$0]  %s1, 64, %s151, [#allocation7]
        $region16: #{tpu_custom_call.1} parent=11 // pred_fallthru
          _
      $region12: #{tpu_custom_call.1} parent=5 // pred_fallthru
        _
      %p154 = scmp.lt.s32.totalorder %s15, 2
      // Predicated region
      $region17: #{tpu_custom_call.1} parent=5 // pred_check
        %p155 = pneg %p154
      $region18: #{tpu_custom_call.1} parent=5 // pred_check_branch
        %157 = sbr.rel (%p155) target = $region20
      $region19: #{tpu_custom_call.1} parent=5 // pred_region
        // Predicated region
        $region21: #{tpu_custom_call.1} parent=19 // pred_check
          %p158 = pneg %p49
        $region22: #{tpu_custom_call.1} parent=19 // pred_check_branch
          %160 = sbr.rel (%p158) target = $region24
        $region23: #{tpu_custom_call.1} parent=19 // pred_region
          #allocation10 [shape = 'u32[6]{0}', space=smem, size = 0x18, scoped, tag = 'DMA stride descriptor']
          %s161 = sand.u32 %s39, 1
          %s162 = scalar_lea.sflag [#allocation4], %s161
          %s163 = sand.u32 %s39, 1
          %s164 = smul.addr %s163, 48
          %s165 = scalar_lea.vmem [#allocation3], %s164
          %s166 = smul.u32 2, %s22
          %s167 = smul.u32 2, %s23
          %s169 = ssub.s32 768, 768
          %170 = vsyncadd %s162, %s169
          %s171 = smul.addr %s166, 12
          %s172 = sadd.s32 %s167, %s171
          %s173 = smul.addr %s172, 64
          %s174 = scalar_lea.hbm %s0, %s173
          %s176 = sshll.u32 1, 14
          %s177 = sxor.u32 4294967295, %s176
          %s179 = sld [smem:[#allocation0]]
          %s180 = sadd.s32 2, %s179
          %s182 = sshll.u32 7, 26
          %s183 = sxor.u32 4294967295, %s182
          %s184 = sand.u32 0, %s183
          %s185 = sshll.u32 %s180, 26
          %s186 = sor.u32 %s184, %s185
          %s187 = sshll.u32 %s165, 4
          %s188 = int_to_ptr.vmem [resolvable:$true] %s187
          %194 = sst [smem:[#allocation10]] 256
          %s195 = scalar_lea.smem [#allocation10], 1
          %196 = sst [smem:[%s195]] 128
          %s197 = scalar_lea.smem [#allocation10], 2
          %198 = sst [smem:[%s197]] 2
          %s199 = scalar_lea.smem [#allocation10], 3
          %200 = sst [smem:[%s199]] 64
          %s201 = scalar_lea.smem [#allocation10], 4
          %202 = sst [smem:[%s201]] 64
          %s203 = scalar_lea.smem [#allocation10], 5
          %204 = sst [smem:[%s203]] 4
          %206 = dma.general %s174, 768, %s188, %s162, [#allocation9], [#allocation10], %s186, 0
        $region24: #{tpu_custom_call.1} parent=19 // pred_fallthru
          _
      $region20: #{tpu_custom_call.1} parent=5 // pred_fallthru
        _
      %p207 = scmp.le.s32.totalorder 1, %s15
      %p208 = scmp.lt.s32.totalorder %s15, 3
      %p209 = pnand %p207, %p208
      %p210 = pneg %p209
      // Predicated region
      $region25: #{tpu_custom_call.1} parent=5 // pred_check
        _
      $region26: #{tpu_custom_call.1} parent=5 // pred_check_branch
        %212 = sbr.rel (%p209) target = $region28
      $region27: #{tpu_custom_call.1} parent=5 // pred_region
        %s213 = ssub.s32 %s15, 1
        %s214 = sand.u32 %s42, 1
        %s215 = scalar_lea.sflag [#allocation4], %s214
        %s216 = sand.u32 %s42, 1
        %s217 = smul.addr %s216, 48
        %s218 = scalar_lea.vmem [#allocation3], %s217
        // Predicated region
        $region29: #{tpu_custom_call.1} parent=27 // pred_check
          %p219 = pneg %p55
        $region30: #{tpu_custom_call.1} parent=27 // pred_check_branch
          %221 = sbr.rel (%p219) target = $region32
        $region31: #{tpu_custom_call.1} parent=27 // pred_region
          %222 = dma.done %s215, 768
        $region32: #{tpu_custom_call.1} parent=27 // pred_fallthru
          _
        // Predicated region
        $region33: #{tpu_custom_call.1} parent=27 // pred_check
          %p223 = pneg %p76
        $region34: #{tpu_custom_call.1} parent=27 // pred_check_branch
          %225 = sbr.rel (%p223) target = $region36
        $region35: #{tpu_custom_call.1} parent=27 // pred_region
          %226 = dma.done [#allocation7], 64
        $region36: #{tpu_custom_call.1} parent=27 // pred_fallthru
          _
        %s227 = sand.u32 %s42, 1
        %s228 = scalar_lea.sflag [#allocation4], %s227
        %s229 = sand.u32 %s42, 1
        %s230 = smul.addr %s229, 48
        %s231 = scalar_lea.vmem [#allocation3], %s230
        %p232 = pneg %p55
        %p233 = pneg %p52
        %p234 = pneg %p76
        %p235 = pneg %p73
        %p236 = pneg %p102
        %p237 = pneg %p99
        %p238 = pneg %p128
        %p239 = pneg %p125
        %p240 = scmp.lt.s32.totalorder %s24, 0
        %s241 = scalar_select %p240, %s24, 0
        %s242 = smul.addr %s241, 2
        %s243 = scalar_lea.vmem %s3, %s242
        %s244 = smul.u32 2, %s24
        %s245 = smul.u32 2, %s25
        %p246 = scmp.lt.s32.totalorder %s24, 0
        %s247 = scalar_select %p246, %s24, 0
        %s248 = smul.addr %s247, 2
        %s249 = scalar_lea.vmem %s3, %s248
        %p250 = scmp.eq.s32.totalorder %s25, 0
        // Predicated region
        $region37: #{tpu_custom_call.1} parent=27 // pred_check
          %p251 = pneg %p250
        $region38: #{tpu_custom_call.1} parent=27 // pred_check_branch
          %253 = sbr.rel (%p251) target = $region40
        $region39: #{tpu_custom_call.1} parent=27 // pred_region
          %254 = vst [vmem:[#allocation2] sm:$0x7] 0.0
          %255 = vst [vmem:[#allocation2 + $0x4] sm:$0x7] 0.0
        $region40: #{tpu_custom_call.1} parent=27 // pred_fallthru
          _
        %v256 = vld [vmem:[%s218] sm:$0xf]
        %v257 = vld [vmem:[%s218 + $0x4] sm:$0xf]
        %v258 = vld [vmem:[%s218 + $0x8] sm:$0xf]
        %v259 = vld [vmem:[%s218 + $0xc] sm:$0xf]
        %v260 = vld [vmem:[%s218 + $0x10] sm:$0xf]
        %v261 = vld [vmem:[%s218 + $0x14] sm:$0xf]
        %v262 = vld [vmem:[%s218 + $0x18] sm:$0xf]
        %v263 = vld [vmem:[%s218 + $0x1c] sm:$0xf]
        %v264 = vld [vmem:[%s218 + $0x20] sm:$0xf]
        %v265 = vld [vmem:[%s218 + $0x24] sm:$0xf]
        %v266 = vld [vmem:[%s218 + $0x28] sm:$0xf]
        %v267 = vld [vmem:[%s218 + $0x2c] sm:$0xf]
        %v268 = vunpack.c.l.bf16 %v256
        %v269 = vunpack.c.l.bf16 %v257
        %v270 = vunpack.c.l.bf16 %v258
        %v271 = vunpack.c.l.bf16 %v259
        %v272 = vunpack.c.l.bf16 %v260
        %v273 = vunpack.c.l.bf16 %v261
        %v274 = vunpack.c.l.bf16 %v262
        %v275 = vunpack.c.l.bf16 %v263
        %v276 = vunpack.c.l.bf16 %v264
        %v277 = vunpack.c.l.bf16 %v265
        %v278 = vunpack.c.l.bf16 %v266
        %v279 = vunpack.c.l.bf16 %v267
        %v280 = vld [vmem:[#allocation2] sm:$0x7]
        %v281 = vld [vmem:[#allocation2 + $0x4] sm:$0x7]
        %v282 = vadd.f32 %v268, %v269
        %v283 = vrot.slane %v282, 4
        %v284 = vadd.f32 %v282, %v283
        %v285 = vrot.slane %v284, 2
        %v286 = vadd.f32 %v284, %v285
        %v287 = vrot.slane %v286, 1
        %v288 = vadd.f32 %v286, %v287
        %v289 = vadd.f32 %v270, %v271
        %v290 = vrot.slane %v289, 4
        %v291 = vadd.f32 %v289, %v290
        %v292 = vrot.slane %v291, 2
        %v293 = vadd.f32 %v291, %v292
        %v294 = vrot.slane %v293, 1
        %v295 = vadd.f32 %v293, %v294
        %v296 = vadd.f32 %v272, %v273
        %v297 = vrot.slane %v296, 4
        %v298 = vadd.f32 %v296, %v297
        %v299 = vrot.slane %v298, 2
        %v300 = vadd.f32 %v298, %v299
        %v301 = vrot.slane %v300, 1
        %v302 = vadd.f32 %v300, %v301
        %v303 = vadd.f32 %v274, %v275
        %v304 = vrot.slane %v303, 4
        %v305 = vadd.f32 %v303, %v304
        %v306 = vrot.slane %v305, 2
        %v307 = vadd.f32 %v305, %v306
        %v308 = vrot.slane %v307, 1
        %v309 = vadd.f32 %v307, %v308
        %v310 = vadd.f32 %v276, %v277
        %v311 = vrot.slane %v310, 4
        %v312 = vadd.f32 %v310, %v311
        %v313 = vrot.slane %v312, 2
        %v314 = vadd.f32 %v312, %v313
        %v315 = vrot.slane %v314, 1
        %v316 = vadd.f32 %v314, %v315
        %v317 = vadd.f32 %v278, %v279
        %v318 = vrot.slane %v317, 4
        %v319 = vadd.f32 %v317, %v318
        %v320 = vrot.slane %v319, 2
        %v321 = vadd.f32 %v319, %v320
        %v322 = vrot.slane %v321, 1
        %v323 = vadd.f32 %v321, %v322
        %vm330 = vcmask 1041409
        %v331 = vsel %vm330, %v295, %v288
        %vm332 = vcmask 1042434
        %v333 = vsel %vm332, %v302, %v331
        %v334 = vsel %vm330, %v316, %v309
        %v335 = vsel %vm332, %v323, %v334
        %v338 = vadd.f32 %v280, %v333
        %v339 = vadd.f32 %v281, %v335
        %340 = vst [vmem:[#allocation2] sm:$0x7] %v338
        %341 = vst [vmem:[#allocation2 + $0x4] sm:$0x7] %v339
        %p342 = scmp.eq.s32.totalorder %s25, 1
        // Predicated region
        $region41: #{tpu_custom_call.1} parent=27 // pred_check
          %p343 = pneg %p342
        $region42: #{tpu_custom_call.1} parent=27 // pred_check_branch
          %345 = sbr.rel (%p343) target = $region44
        $region43: #{tpu_custom_call.1} parent=27 // pred_region
          %v346 = vld [vmem:[#allocation2] sm:$0x7]
          %v347 = vld [vmem:[#allocation2 + $0x4] sm:$0x7]
          %vm348 = vcmask 1042432
          %v349 = vsel %vm348, %v346, 0.0
          %350 = vadd.xlane.f32.xlu0 %v349
          %v351 = vpop.xlane.xlu0 %350
          %v352 = vsel %vm348, %v347, 0.0
          %353 = vadd.xlane.f32.xlu0 %v352
          %v354 = vpop.xlane.xlu0 %353
          %v355 = vmul.f32 %v351, 0.00024414063
          %v356 = vmul.f32 %v354, 0.00024414063
          %v357 = vsub.f32 %v355, 127.5
          %v358 = vsub.f32 %v356, 127.5
          %v359 = vmul.f32 %v357, 0.007843138
          %v360 = vmul.f32 %v358, 0.007843138
          %v361 = vld [vmem:[#allocation6] sm:$0x7]
          %v362 = vlaneseq
          %v363 = vshrl.u32 %v362, 7
          %v364 = vsub.s32 0, %v363
          %v365 = vrot.slane %v359, %v364
          %v366 = vlaneseq
          %v367 = vshrl.u32 %v366, 7
          %v368 = vsub.s32 0, %v367
          %v369 = vrot.slane %v360, %v368
          %v370 = vlaneseq
          %v371 = vshrl.u32 %v370, 7
          %v372 = vsub.s32 0, %v371
          %v373 = vrot.slane %v361, %v372
          %376 = vbcast.lane.b32.xlu0 %v373, 256
          %v377 = vpop.permute.xlu0 %376
          %s379 = sor.u32 256, 8
          %380 = vbcast.lane.b32.xlu0 %v373, %s379
          %v381 = vpop.permute.xlu0 %380
          %s383 = sor.u32 256, 16
          %384 = vbcast.lane.b32.xlu0 %v373, %s383
          %v385 = vpop.permute.xlu0 %384
          %s387 = sor.u32 256, 24
          %388 = vbcast.lane.b32.xlu0 %v373, %s387
          %v389 = vpop.permute.xlu0 %388
          %s391 = sor.u32 256, 32
          %392 = vbcast.lane.b32.xlu0 %v373, %s391
          %v393 = vpop.permute.xlu0 %392
          %s395 = sor.u32 256, 40
          %396 = vbcast.lane.b32.xlu0 %v373, %s395
          %v397 = vpop.permute.xlu0 %396
          %s399 = sor.u32 256, 48
          %400 = vbcast.lane.b32.xlu0 %v373, %s399
          %v401 = vpop.permute.xlu0 %400
          %s403 = sor.u32 256, 56
          %404 = vbcast.lane.b32.xlu0 %v373, %s403
          %v405 = vpop.permute.xlu0 %404
          %s407 = sor.u32 256, 64
          %408 = vbcast.lane.b32.xlu0 %v373, %s407
          %v409 = vpop.permute.xlu0 %408
          %s411 = sor.u32 256, 72
          %412 = vbcast.lane.b32.xlu0 %v373, %s411
          %v413 = vpop.permute.xlu0 %412
          %s415 = sor.u32 256, 80
          %416 = vbcast.lane.b32.xlu0 %v373, %s415
          %v417 = vpop.permute.xlu0 %416
          %s419 = sor.u32 256, 88
          %420 = vbcast.lane.b32.xlu0 %v373, %s419
          %v421 = vpop.permute.xlu0 %420
          %s423 = sor.u32 256, 96
          %424 = vbcast.lane.b32.xlu0 %v373, %s423
          %v425 = vpop.permute.xlu0 %424
          %s427 = sor.u32 256, 104
          %428 = vbcast.lane.b32.xlu0 %v373, %s427
          %v429 = vpop.permute.xlu0 %428
          %s431 = sor.u32 256, 112
          %432 = vbcast.lane.b32.xlu0 %v373, %s431
          %v433 = vpop.permute.xlu0 %432
          %s435 = sor.u32 256, 120
          %436 = vbcast.lane.b32.xlu0 %v373, %s435
          %v437 = vpop.permute.xlu0 %436
          %v454 = vmul.f32 %v365, %v377
          %v455 = vmul.f32 %v365, %v381
          %v456 = vmul.f32 %v365, %v385
          %v457 = vmul.f32 %v365, %v389
          %v458 = vmul.f32 %v365, %v393
          %v459 = vmul.f32 %v365, %v397
          %v460 = vmul.f32 %v365, %v401
          %v461 = vmul.f32 %v365, %v405
          %v462 = vmul.f32 %v365, %v409
          %v463 = vmul.f32 %v365, %v413
          %v464 = vmul.f32 %v365, %v417
          %v465 = vmul.f32 %v365, %v421
          %v466 = vmul.f32 %v365, %v425
          %v467 = vmul.f32 %v365, %v429
          %v468 = vmul.f32 %v365, %v433
          %v469 = vmul.f32 %v365, %v437
          %v470 = vmul.f32 %v369, %v377
          %v471 = vmul.f32 %v369, %v381
          %v472 = vmul.f32 %v369, %v385
          %v473 = vmul.f32 %v369, %v389
          %v474 = vmul.f32 %v369, %v393
          %v475 = vmul.f32 %v369, %v397
          %v476 = vmul.f32 %v369, %v401
          %v477 = vmul.f32 %v369, %v405
          %v478 = vmul.f32 %v369, %v409
          %v479 = vmul.f32 %v369, %v413
          %v480 = vmul.f32 %v369, %v417
          %v481 = vmul.f32 %v369, %v421
          %v482 = vmul.f32 %v369, %v425
          %v483 = vmul.f32 %v369, %v429
          %v484 = vmul.f32 %v369, %v433
          %v485 = vmul.f32 %v369, %v437
          %v486 = vlaneseq
          %v487 = vshrl.u32 %v486, 7
          %v488 = vsub.s32 1, %v487
          %v489 = vrot.slane %v359, %v488
          %v490 = vlaneseq
          %v491 = vshrl.u32 %v490, 7
          %v492 = vsub.s32 1, %v491
          %v493 = vrot.slane %v360, %v492
          %v494 = vlaneseq
          %v495 = vshrl.u32 %v494, 7
          %v496 = vsub.s32 1, %v495
          %v497 = vrot.slane %v361, %v496
          %500 = vbcast.lane.b32.xlu0 %v497, 256
          %v501 = vpop.permute.xlu0 %500
          %s503 = sor.u32 256, 8
          %504 = vbcast.lane.b32.xlu0 %v497, %s503
          %v505 = vpop.permute.xlu0 %504
          %s507 = sor.u32 256, 16
          %508 = vbcast.lane.b32.xlu0 %v497, %s507
          %v509 = vpop.permute.xlu0 %508
          %s511 = sor.u32 256, 24
          %512 = vbcast.lane.b32.xlu0 %v497, %s511
          %v513 = vpop.permute.xlu0 %512
          %s515 = sor.u32 256, 32
          %516 = vbcast.lane.b32.xlu0 %v497, %s515
          %v517 = vpop.permute.xlu0 %516
          %s519 = sor.u32 256, 40
          %520 = vbcast.lane.b32.xlu0 %v497, %s519
          %v521 = vpop.permute.xlu0 %520
          %s523 = sor.u32 256, 48
          %524 = vbcast.lane.b32.xlu0 %v497, %s523
          %v525 = vpop.permute.xlu0 %524
          %s527 = sor.u32 256, 56
          %528 = vbcast.lane.b32.xlu0 %v497, %s527
          %v529 = vpop.permute.xlu0 %528
          %s531 = sor.u32 256, 64
          %532 = vbcast.lane.b32.xlu0 %v497, %s531
          %v533 = vpop.permute.xlu0 %532
          %s535 = sor.u32 256, 72
          %536 = vbcast.lane.b32.xlu0 %v497, %s535
          %v537 = vpop.permute.xlu0 %536
          %s539 = sor.u32 256, 80
          %540 = vbcast.lane.b32.xlu0 %v497, %s539
          %v541 = vpop.permute.xlu0 %540
          %s543 = sor.u32 256, 88
          %544 = vbcast.lane.b32.xlu0 %v497, %s543
          %v545 = vpop.permute.xlu0 %544
          %s547 = sor.u32 256, 96
          %548 = vbcast.lane.b32.xlu0 %v497, %s547
          %v549 = vpop.permute.xlu0 %548
          %s551 = sor.u32 256, 104
          %552 = vbcast.lane.b32.xlu0 %v497, %s551
          %v553 = vpop.permute.xlu0 %552
          %s555 = sor.u32 256, 112
          %556 = vbcast.lane.b32.xlu0 %v497, %s555
          %v557 = vpop.permute.xlu0 %556
          %s559 = sor.u32 256, 120
          %560 = vbcast.lane.b32.xlu0 %v497, %s559
          %v561 = vpop.permute.xlu0 %560
          %v578 = vmul.f32 %v489, %v501
          %v579 = vmul.f32 %v489, %v505
          %v580 = vmul.f32 %v489, %v509
          %v581 = vmul.f32 %v489, %v513
          %v582 = vmul.f32 %v489, %v517
          %v583 = vmul.f32 %v489, %v521
          %v584 = vmul.f32 %v489, %v525
          %v585 = vmul.f32 %v489, %v529
          %v586 = vmul.f32 %v489, %v533
          %v587 = vmul.f32 %v489, %v537
          %v588 = vmul.f32 %v489, %v541
          %v589 = vmul.f32 %v489, %v545
          %v590 = vmul.f32 %v489, %v549
          %v591 = vmul.f32 %v489, %v553
          %v592 = vmul.f32 %v489, %v557
          %v593 = vmul.f32 %v489, %v561
          %v594 = vmul.f32 %v493, %v501
          %v595 = vmul.f32 %v493, %v505
          %v596 = vmul.f32 %v493, %v509
          %v597 = vmul.f32 %v493, %v513
          %v598 = vmul.f32 %v493, %v517
          %v599 = vmul.f32 %v493, %v521
          %v600 = vmul.f32 %v493, %v525
          %v601 = vmul.f32 %v493, %v529
          %v602 = vmul.f32 %v493, %v533
          %v603 = vmul.f32 %v493, %v537
          %v604 = vmul.f32 %v493, %v541
          %v605 = vmul.f32 %v493, %v545
          %v606 = vmul.f32 %v493, %v549
          %v607 = vmul.f32 %v493, %v553
          %v608 = vmul.f32 %v493, %v557
          %v609 = vmul.f32 %v493, %v561
          %v610 = vadd.f32 %v454, %v578
          %v611 = vadd.f32 %v455, %v579
          %v612 = vadd.f32 %v456, %v580
          %v613 = vadd.f32 %v457, %v581
          %v614 = vadd.f32 %v458, %v582
          %v615 = vadd.f32 %v459, %v583
          %v616 = vadd.f32 %v460, %v584
          %v617 = vadd.f32 %v461, %v585
          %v618 = vadd.f32 %v462, %v586
          %v619 = vadd.f32 %v463, %v587
          %v620 = vadd.f32 %v464, %v588
          %v621 = vadd.f32 %v465, %v589
          %v622 = vadd.f32 %v466, %v590
          %v623 = vadd.f32 %v467, %v591
          %v624 = vadd.f32 %v468, %v592
          %v625 = vadd.f32 %v469, %v593
          %v626 = vadd.f32 %v470, %v594
          %v627 = vadd.f32 %v471, %v595
          %v628 = vadd.f32 %v472, %v596
          %v629 = vadd.f32 %v473, %v597
          %v630 = vadd.f32 %v474, %v598
          %v631 = vadd.f32 %v475, %v599
          %v632 = vadd.f32 %v476, %v600
          %v633 = vadd.f32 %v477, %v601
          %v634 = vadd.f32 %v478, %v602
          %v635 = vadd.f32 %v479, %v603
          %v636 = vadd.f32 %v480, %v604
          %v637 = vadd.f32 %v481, %v605
          %v638 = vadd.f32 %v482, %v606
          %v639 = vadd.f32 %v483, %v607
          %v640 = vadd.f32 %v484, %v608
          %v641 = vadd.f32 %v485, %v609
          %v642 = vlaneseq
          %v643 = vshrl.u32 %v642, 7
          %v644 = vsub.s32 2, %v643
          %v645 = vrot.slane %v359, %v644
          %v646 = vlaneseq
          %v647 = vshrl.u32 %v646, 7
          %v648 = vsub.s32 2, %v647
          %v649 = vrot.slane %v360, %v648
          %v650 = vlaneseq
          %v651 = vshrl.u32 %v650, 7
          %v652 = vsub.s32 2, %v651
          %v653 = vrot.slane %v361, %v652
          %656 = vbcast.lane.b32.xlu0 %v653, 256
          %v657 = vpop.permute.xlu0 %656
          %s659 = sor.u32 256, 8
          %660 = vbcast.lane.b32.xlu0 %v653, %s659
          %v661 = vpop.permute.xlu0 %660
          %s663 = sor.u32 256, 16
          %664 = vbcast.lane.b32.xlu0 %v653, %s663
          %v665 = vpop.permute.xlu0 %664
          %s667 = sor.u32 256, 24
          %668 = vbcast.lane.b32.xlu0 %v653, %s667
          %v669 = vpop.permute.xlu0 %668
          %s671 = sor.u32 256, 32
          %672 = vbcast.lane.b32.xlu0 %v653, %s671
          %v673 = vpop.permute.xlu0 %672
          %s675 = sor.u32 256, 40
          %676 = vbcast.lane.b32.xlu0 %v653, %s675
          %v677 = vpop.permute.xlu0 %676
          %s679 = sor.u32 256, 48
          %680 = vbcast.lane.b32.xlu0 %v653, %s679
          %v681 = vpop.permute.xlu0 %680
          %s683 = sor.u32 256, 56
          %684 = vbcast.lane.b32.xlu0 %v653, %s683
          %v685 = vpop.permute.xlu0 %684
          %s687 = sor.u32 256, 64
          %688 = vbcast.lane.b32.xlu0 %v653, %s687
          %v689 = vpop.permute.xlu0 %688
          %s691 = sor.u32 256, 72
          %692 = vbcast.lane.b32.xlu0 %v653, %s691
          %v693 = vpop.permute.xlu0 %692
          %s695 = sor.u32 256, 80
          %696 = vbcast.lane.b32.xlu0 %v653, %s695
          %v697 = vpop.permute.xlu0 %696
          %s699 = sor.u32 256, 88
          %700 = vbcast.lane.b32.xlu0 %v653, %s699
          %v701 = vpop.permute.xlu0 %700
          %s703 = sor.u32 256, 96
          %704 = vbcast.lane.b32.xlu0 %v653, %s703
          %v705 = vpop.permute.xlu0 %704
          %s707 = sor.u32 256, 104
          %708 = vbcast.lane.b32.xlu0 %v653, %s707
          %v709 = vpop.permute.xlu0 %708
          %s711 = sor.u32 256, 112
          %712 = vbcast.lane.b32.xlu0 %v653, %s711
          %v713 = vpop.permute.xlu0 %712
          %s715 = sor.u32 256, 120
          %716 = vbcast.lane.b32.xlu0 %v653, %s715
          %v717 = vpop.permute.xlu0 %716
          %v734 = vmul.f32 %v645, %v657
          %v735 = vmul.f32 %v645, %v661
          %v736 = vmul.f32 %v645, %v665
          %v737 = vmul.f32 %v645, %v669
          %v738 = vmul.f32 %v645, %v673
          %v739 = vmul.f32 %v645, %v677
          %v740 = vmul.f32 %v645, %v681
          %v741 = vmul.f32 %v645, %v685
          %v742 = vmul.f32 %v645, %v689
          %v743 = vmul.f32 %v645, %v693
          %v744 = vmul.f32 %v645, %v697
          %v745 = vmul.f32 %v645, %v701
          %v746 = vmul.f32 %v645, %v705
          %v747 = vmul.f32 %v645, %v709
          %v748 = vmul.f32 %v645, %v713
          %v749 = vmul.f32 %v645, %v717
          %v750 = vmul.f32 %v649, %v657
          %v751 = vmul.f32 %v649, %v661
          %v752 = vmul.f32 %v649, %v665
          %v753 = vmul.f32 %v649, %v669
          %v754 = vmul.f32 %v649, %v673
          %v755 = vmul.f32 %v649, %v677
          %v756 = vmul.f32 %v649, %v681
          %v757 = vmul.f32 %v649, %v685
          %v758 = vmul.f32 %v649, %v689
          %v759 = vmul.f32 %v649, %v693
          %v760 = vmul.f32 %v649, %v697
          %v761 = vmul.f32 %v649, %v701
          %v762 = vmul.f32 %v649, %v705
          %v763 = vmul.f32 %v649, %v709
          %v764 = vmul.f32 %v649, %v713
          %v765 = vmul.f32 %v649, %v717
          %v766 = vadd.f32 %v610, %v734
          %v767 = vadd.f32 %v611, %v735
          %v768 = vadd.f32 %v612, %v736
          %v769 = vadd.f32 %v613, %v737
          %v770 = vadd.f32 %v614, %v738
          %v771 = vadd.f32 %v615, %v739
          %v772 = vadd.f32 %v616, %v740
          %v773 = vadd.f32 %v617, %v741
          %v774 = vadd.f32 %v618, %v742
          %v775 = vadd.f32 %v619, %v743
          %v776 = vadd.f32 %v620, %v744
          %v777 = vadd.f32 %v621, %v745
          %v778 = vadd.f32 %v622, %v746
          %v779 = vadd.f32 %v623, %v747
          %v780 = vadd.f32 %v624, %v748
          %v781 = vadd.f32 %v625, %v749
          %v782 = vadd.f32 %v626, %v750
          %v783 = vadd.f32 %v627, %v751
          %v784 = vadd.f32 %v628, %v752
          %v785 = vadd.f32 %v629, %v753
          %v786 = vadd.f32 %v630, %v754
          %v787 = vadd.f32 %v631, %v755
          %v788 = vadd.f32 %v632, %v756
          %v789 = vadd.f32 %v633, %v757
          %v790 = vadd.f32 %v634, %v758
          %v791 = vadd.f32 %v635, %v759
          %v792 = vadd.f32 %v636, %v760
          %v793 = vadd.f32 %v637, %v761
          %v794 = vadd.f32 %v638, %v762
          %v795 = vadd.f32 %v639, %v763
          %v796 = vadd.f32 %v640, %v764
          %v797 = vadd.f32 %v641, %v765
          %v798 = vmul.f32 %v766, %v766
          %v799 = vmul.f32 %v767, %v767
          %v800 = vmul.f32 %v768, %v768
          %v801 = vmul.f32 %v769, %v769
          %v802 = vmul.f32 %v770, %v770
          %v803 = vmul.f32 %v771, %v771
          %v804 = vmul.f32 %v772, %v772
          %v805 = vmul.f32 %v773, %v773
          %v806 = vmul.f32 %v774, %v774
          %v807 = vmul.f32 %v775, %v775
          %v808 = vmul.f32 %v776, %v776
          %v809 = vmul.f32 %v777, %v777
          %v810 = vmul.f32 %v778, %v778
          %v811 = vmul.f32 %v779, %v779
          %v812 = vmul.f32 %v780, %v780
          %v813 = vmul.f32 %v781, %v781
          %v814 = vmul.f32 %v782, %v782
          %v815 = vmul.f32 %v783, %v783
          %v816 = vmul.f32 %v784, %v784
          %v817 = vmul.f32 %v785, %v785
          %v818 = vmul.f32 %v786, %v786
          %v819 = vmul.f32 %v787, %v787
          %v820 = vmul.f32 %v788, %v788
          %v821 = vmul.f32 %v789, %v789
          %v822 = vmul.f32 %v790, %v790
          %v823 = vmul.f32 %v791, %v791
          %v824 = vmul.f32 %v792, %v792
          %v825 = vmul.f32 %v793, %v793
          %v826 = vmul.f32 %v794, %v794
          %v827 = vmul.f32 %v795, %v795
          %v828 = vmul.f32 %v796, %v796
          %v829 = vmul.f32 %v797, %v797
          %862 = vset.pattern.permute.xlu0 0
          %863 = vperm.xlu0 %862, %v798
          %v864 = vpop.permute.xlu0 %863
          %865 = vset.pattern.permute.xlu0 0
          %866 = vperm.xlu0 %865, %v799
          %v867 = vpop.permute.xlu0 %866
          %868 = vset.pattern.permute.xlu0 0
          %869 = vperm.xlu0 %868, %v800
          %v870 = vpop.permute.xlu0 %869
          %871 = vset.pattern.permute.xlu0 0
          %872 = vperm.xlu0 %871, %v801
          %v873 = vpop.permute.xlu0 %872
          %874 = vset.pattern.permute.xlu0 0
          %875 = vperm.xlu0 %874, %v802
          %v876 = vpop.permute.xlu0 %875
          %877 = vset.pattern.permute.xlu0 0
          %878 = vperm.xlu0 %877, %v803
          %v879 = vpop.permute.xlu0 %878
          %880 = vset.pattern.permute.xlu0 0
          %881 = vperm.xlu0 %880, %v804
          %v882 = vpop.permute.xlu0 %881
          %883 = vset.pattern.permute.xlu0 0
          %884 = vperm.xlu0 %883, %v805
          %v885 = vpop.permute.xlu0 %884
          %886 = vset.pattern.permute.xlu0 0
          %887 = vperm.xlu0 %886, %v806
          %v888 = vpop.permute.xlu0 %887
          %889 = vset.pattern.permute.xlu0 0
          %890 = vperm.xlu0 %889, %v807
          %v891 = vpop.permute.xlu0 %890
          %892 = vset.pattern.permute.xlu0 0
          %893 = vperm.xlu0 %892, %v808
          %v894 = vpop.permute.xlu0 %893
          %895 = vset.pattern.permute.xlu0 0
          %896 = vperm.xlu0 %895, %v809
          %v897 = vpop.permute.xlu0 %896
          %898 = vset.pattern.permute.xlu0 0
          %899 = vperm.xlu0 %898, %v810
          %v900 = vpop.permute.xlu0 %899
          %901 = vset.pattern.permute.xlu0 0
          %902 = vperm.xlu0 %901, %v811
          %v903 = vpop.permute.xlu0 %902
          %904 = vset.pattern.permute.xlu0 0
          %905 = vperm.xlu0 %904, %v812
          %v906 = vpop.permute.xlu0 %905
          %907 = vset.pattern.permute.xlu0 0
          %908 = vperm.xlu0 %907, %v813
          %v909 = vpop.permute.xlu0 %908
          %910 = vset.pattern.permute.xlu0 0
          %911 = vperm.xlu0 %910, %v814
          %v912 = vpop.permute.xlu0 %911
          %913 = vset.pattern.permute.xlu0 0
          %914 = vperm.xlu0 %913, %v815
          %v915 = vpop.permute.xlu0 %914
          %916 = vset.pattern.permute.xlu0 0
          %917 = vperm.xlu0 %916, %v816
          %v918 = vpop.permute.xlu0 %917
          %919 = vset.pattern.permute.xlu0 0
          %920 = vperm.xlu0 %919, %v817
          %v921 = vpop.permute.xlu0 %920
          %922 = vset.pattern.permute.xlu0 0
          %923 = vperm.xlu0 %922, %v818
          %v924 = vpop.permute.xlu0 %923
          %925 = vset.pattern.permute.xlu0 0
          %926 = vperm.xlu0 %925, %v819
          %v927 = vpop.permute.xlu0 %926
          %928 = vset.pattern.permute.xlu0 0
          %929 = vperm.xlu0 %928, %v820
          %v930 = vpop.permute.xlu0 %929
          %931 = vset.pattern.permute.xlu0 0
          %932 = vperm.xlu0 %931, %v821
          %v933 = vpop.permute.xlu0 %932
          %934 = vset.pattern.permute.xlu0 0
          %935 = vperm.xlu0 %934, %v822
          %v936 = vpop.permute.xlu0 %935
          %937 = vset.pattern.permute.xlu0 0
          %938 = vperm.xlu0 %937, %v823
          %v939 = vpop.permute.xlu0 %938
          %940 = vset.pattern.permute.xlu0 0
          %941 = vperm.xlu0 %940, %v824
          %v942 = vpop.permute.xlu0 %941
          %943 = vset.pattern.permute.xlu0 0
          %944 = vperm.xlu0 %943, %v825
          %v945 = vpop.permute.xlu0 %944
          %946 = vset.pattern.permute.xlu0 0
          %947 = vperm.xlu0 %946, %v826
          %v948 = vpop.permute.xlu0 %947
          %949 = vset.pattern.permute.xlu0 0
          %950 = vperm.xlu0 %949, %v827
          %v951 = vpop.permute.xlu0 %950
          %952 = vset.pattern.permute.xlu0 0
          %953 = vperm.xlu0 %952, %v828
          %v954 = vpop.permute.xlu0 %953
          %955 = vset.pattern.permute.xlu0 0
          %956 = vperm.xlu0 %955, %v829
          %v957 = vpop.permute.xlu0 %956
          %v958 = vlaneseq
          %v959 = vand.u32 %v958, 127
          %v960 = vlaneseq
          %v961 = vshrl.u32 %v960, 7
          %v962 = vsub.s32 %v959, %v961
          %v963 = vrot.slane %v864, %v962
          %v964 = vadd.s32 %v959, 4294967288
          %v965 = vlaneseq
          %v966 = vshrl.u32 %v965, 7
          %v967 = vsub.s32 %v964, %v966
          %v968 = vrot.slane %v867, %v967
          %vm969 = vcmask 130112
          %v970 = vsel %vm969, %v968, %v963
          %v971 = vadd.s32 %v959, 4294967280
          %v972 = vlaneseq
          %v973 = vshrl.u32 %v972, 7
          %v974 = vsub.s32 %v971, %v973
          %v975 = vrot.slane %v870, %v974
          %vm976 = vcmask 195712
          %v977 = vsel %vm976, %v975, %v970
          %v978 = vadd.s32 %v959, 4294967272
          %v979 = vlaneseq
          %v980 = vshrl.u32 %v979, 7
          %v981 = vsub.s32 %v978, %v980
          %v982 = vrot.slane %v873, %v981
          %vm983 = vcmask 261312
          %v984 = vsel %vm983, %v982, %v977
          %v985 = vadd.s32 %v959, 4294967264
          %v986 = vlaneseq
          %v987 = vshrl.u32 %v986, 7
          %v988 = vsub.s32 %v985, %v987
          %v989 = vrot.slane %v876, %v988
          %vm990 = vcmask 326912
          %v991 = vsel %vm990, %v989, %v984
          %v992 = vadd.s32 %v959, 4294967256
          %v993 = vlaneseq
          %v994 = vshrl.u32 %v993, 7
          %v995 = vsub.s32 %v992, %v994
          %v996 = vrot.slane %v879, %v995
          %vm997 = vcmask 392512
          %v998 = vsel %vm997, %v996, %v991
          %v999 = vadd.s32 %v959, 4294967248
          %v1000 = vlaneseq
          %v1001 = vshrl.u32 %v1000, 7
          %v1002 = vsub.s32 %v999, %v1001
          %v1003 = vrot.slane %v882, %v1002
          %vm1004 = vcmask 458112
          %v1005 = vsel %vm1004, %v1003, %v998
          %v1006 = vadd.s32 %v959, 4294967240
          %v1007 = vlaneseq
          %v1008 = vshrl.u32 %v1007, 7
          %v1009 = vsub.s32 %v1006, %v1008
          %v1010 = vrot.slane %v885, %v1009
          %vm1011 = vcmask 523712
          %v1012 = vsel %vm1011, %v1010, %v1005
          %v1013 = vadd.s32 %v959, 4294967232
          %v1014 = vlaneseq
          %v1015 = vshrl.u32 %v1014, 7
          %v1016 = vsub.s32 %v1013, %v1015
          %v1017 = vrot.slane %v888, %v1016
          %vm1018 = vcmask 589312
          %v1019 = vsel %vm1018, %v1017, %v1012
          %v1020 = vadd.s32 %v959, 4294967224
          %v1021 = vlaneseq
          %v1022 = vshrl.u32 %v1021, 7
          %v1023 = vsub.s32 %v1020, %v1022
          %v1024 = vrot.slane %v891, %v1023
          %vm1025 = vcmask 654912
          %v1026 = vsel %vm1025, %v1024, %v1019
          %v1027 = vadd.s32 %v959, 4294967216
          %v1028 = vlaneseq
          %v1029 = vshrl.u32 %v1028, 7
          %v1030 = vsub.s32 %v1027, %v1029
          %v1031 = vrot.slane %v894, %v1030
          %vm1032 = vcmask 720512
          %v1033 = vsel %vm1032, %v1031, %v1026
          %v1034 = vadd.s32 %v959, 4294967208
          %v1035 = vlaneseq
          %v1036 = vshrl.u32 %v1035, 7
          %v1037 = vsub.s32 %v1034, %v1036
          %v1038 = vrot.slane %v897, %v1037
          %vm1039 = vcmask 786112
          %v1040 = vsel %vm1039, %v1038, %v1033
          %v1041 = vadd.s32 %v959, 4294967200
          %v1042 = vlaneseq
          %v1043 = vshrl.u32 %v1042, 7
          %v1044 = vsub.s32 %v1041, %v1043
          %v1045 = vrot.slane %v900, %v1044
          %vm1046 = vcmask 851712
          %v1047 = vsel %vm1046, %v1045, %v1040
          %v1048 = vadd.s32 %v959, 4294967192
          %v1049 = vlaneseq
          %v1050 = vshrl.u32 %v1049, 7
          %v1051 = vsub.s32 %v1048, %v1050
          %v1052 = vrot.slane %v903, %v1051
          %vm1053 = vcmask 917312
          %v1054 = vsel %vm1053, %v1052, %v1047
          %v1055 = vadd.s32 %v959, 4294967184
          %v1056 = vlaneseq
          %v1057 = vshrl.u32 %v1056, 7
          %v1058 = vsub.s32 %v1055, %v1057
          %v1059 = vrot.slane %v906, %v1058
          %vm1060 = vcmask 982912
          %v1061 = vsel %vm1060, %v1059, %v1054
          %v1062 = vadd.s32 %v959, 4294967176
          %v1063 = vlaneseq
          %v1064 = vshrl.u32 %v1063, 7
          %v1065 = vsub.s32 %v1062, %v1064
          %v1066 = vrot.slane %v909, %v1065
          %vm1067 = vcmask 1048512
          %v1068 = vsel %vm1067, %v1066, %v1061
          %v1069 = vlaneseq
          %v1070 = vshrl.u32 %v1069, 7
          %v1071 = vsub.s32 %v959, %v1070
          %v1072 = vrot.slane %v912, %v1071
          %v1073 = vlaneseq
          %v1074 = vshrl.u32 %v1073, 7
          %v1075 = vsub.s32 %v964, %v1074
          %v1076 = vrot.slane %v915, %v1075
          %v1077 = vsel %vm969, %v1076, %v1072
          %v1078 = vlaneseq
          %v1079 = vshrl.u32 %v1078, 7
          %v1080 = vsub.s32 %v971, %v1079
          %v1081 = vrot.slane %v918, %v1080
          %v1082 = vsel %vm976, %v1081, %v1077
          %v1083 = vlaneseq
          %v1084 = vshrl.u32 %v1083, 7
          %v1085 = vsub.s32 %v978, %v1084
          %v1086 = vrot.slane %v921, %v1085
          %v1087 = vsel %vm983, %v1086, %v1082
          %v1088 = vlaneseq
          %v1089 = vshrl.u32 %v1088, 7
          %v1090 = vsub.s32 %v985, %v1089
          %v1091 = vrot.slane %v924, %v1090
          %v1092 = vsel %vm990, %v1091, %v1087
          %v1093 = vlaneseq
          %v1094 = vshrl.u32 %v1093, 7
          %v1095 = vsub.s32 %v992, %v1094
          %v1096 = vrot.slane %v927, %v1095
          %v1097 = vsel %vm997, %v1096, %v1092
          %v1098 = vlaneseq
          %v1099 = vshrl.u32 %v1098, 7
          %v1100 = vsub.s32 %v999, %v1099
          %v1101 = vrot.slane %v930, %v1100
          %v1102 = vsel %vm1004, %v1101, %v1097
          %v1103 = vlaneseq
          %v1104 = vshrl.u32 %v1103, 7
          %v1105 = vsub.s32 %v1006, %v1104
          %v1106 = vrot.slane %v933, %v1105
          %v1107 = vsel %vm1011, %v1106, %v1102
          %v1108 = vlaneseq
          %v1109 = vshrl.u32 %v1108, 7
          %v1110 = vsub.s32 %v1013, %v1109
          %v1111 = vrot.slane %v936, %v1110
          %v1112 = vsel %vm1018, %v1111, %v1107
          %v1113 = vlaneseq
          %v1114 = vshrl.u32 %v1113, 7
          %v1115 = vsub.s32 %v1020, %v1114
          %v1116 = vrot.slane %v939, %v1115
          %v1117 = vsel %vm1025, %v1116, %v1112
          %v1118 = vlaneseq
          %v1119 = vshrl.u32 %v1118, 7
          %v1120 = vsub.s32 %v1027, %v1119
          %v1121 = vrot.slane %v942, %v1120
          %v1122 = vsel %vm1032, %v1121, %v1117
          %v1123 = vlaneseq
          %v1124 = vshrl.u32 %v1123, 7
          %v1125 = vsub.s32 %v1034, %v1124
          %v1126 = vrot.slane %v945, %v1125
          %v1127 = vsel %vm1039, %v1126, %v1122
          %v1128 = vlaneseq
          %v1129 = vshrl.u32 %v1128, 7
          %v1130 = vsub.s32 %v1041, %v1129
          %v1131 = vrot.slane %v948, %v1130
          %v1132 = vsel %vm1046, %v1131, %v1127
          %v1133 = vlaneseq
          %v1134 = vshrl.u32 %v1133, 7
          %v1135 = vsub.s32 %v1048, %v1134
          %v1136 = vrot.slane %v951, %v1135
          %v1137 = vsel %vm1053, %v1136, %v1132
          %v1138 = vlaneseq
          %v1139 = vshrl.u32 %v1138, 7
          %v1140 = vsub.s32 %v1055, %v1139
          %v1141 = vrot.slane %v954, %v1140
          %v1142 = vsel %vm1060, %v1141, %v1137
          %v1143 = vlaneseq
          %v1144 = vshrl.u32 %v1143, 7
          %v1145 = vsub.s32 %v1062, %v1144
          %v1146 = vrot.slane %v957, %v1145
          %v1147 = vsel %vm1067, %v1146, %v1142
          %v1148 = vsel %vm330, %v1147, %v1068
          %vm1150 = vcmask 1041408
          %v1151 = vsel %vm1150, %v1148, 0.0
          %1152 = vadd.xlane.f32.xlu0 %v1151
          %v1153 = vpop.xlane.xlu0 %1152
          %v1154 = vrsqrt.pop %v1153
          %v1156 = vlaneseq
          %v1157 = vshrl.u32 %v1156, 7
          %v1158 = vsub.s32 0, %v1157
          %v1159 = vrot.slane %v1154, %v1158
          %v1160 = vlaneseq
          %v1161 = vshrl.u32 %v1160, 7
          %v1162 = vsub.s32 1, %v1161
          %v1163 = vrot.slane %v1154, %v1162
          %v1166 = vmul.f32 %v766, %v1159
          %v1167 = vmul.f32 %v767, %v1159
          %v1168 = vmul.f32 %v768, %v1159
          %v1169 = vmul.f32 %v769, %v1159
          %v1170 = vmul.f32 %v770, %v1159
          %v1171 = vmul.f32 %v771, %v1159
          %v1172 = vmul.f32 %v772, %v1159
          %v1173 = vmul.f32 %v773, %v1159
          %v1174 = vmul.f32 %v774, %v1159
          %v1175 = vmul.f32 %v775, %v1159
          %v1176 = vmul.f32 %v776, %v1159
          %v1177 = vmul.f32 %v777, %v1159
          %v1178 = vmul.f32 %v778, %v1159
          %v1179 = vmul.f32 %v779, %v1159
          %v1180 = vmul.f32 %v780, %v1159
          %v1181 = vmul.f32 %v781, %v1159
          %v1182 = vmul.f32 %v782, %v1163
          %v1183 = vmul.f32 %v783, %v1163
          %v1184 = vmul.f32 %v784, %v1163
          %v1185 = vmul.f32 %v785, %v1163
          %v1186 = vmul.f32 %v786, %v1163
          %v1187 = vmul.f32 %v787, %v1163
          %v1188 = vmul.f32 %v788, %v1163
          %v1189 = vmul.f32 %v789, %v1163
          %v1190 = vmul.f32 %v790, %v1163
          %v1191 = vmul.f32 %v791, %v1163
          %v1192 = vmul.f32 %v792, %v1163
          %v1193 = vmul.f32 %v793, %v1163
          %v1194 = vmul.f32 %v794, %v1163
          %v1195 = vmul.f32 %v795, %v1163
          %v1196 = vmul.f32 %v796, %v1163
          %v1197 = vmul.f32 %v797, %v1163
          %1230 = vset.pattern.permute.xlu0 0
          %1231 = vperm.xlu0 %1230, %v1166
          %v1232 = vpop.permute.xlu0 %1231
          %1233 = vset.pattern.permute.xlu0 0
          %1234 = vperm.xlu0 %1233, %v1167
          %v1235 = vpop.permute.xlu0 %1234
          %1236 = vset.pattern.permute.xlu0 0
          %1237 = vperm.xlu0 %1236, %v1168
          %v1238 = vpop.permute.xlu0 %1237
          %1239 = vset.pattern.permute.xlu0 0
          %1240 = vperm.xlu0 %1239, %v1169
          %v1241 = vpop.permute.xlu0 %1240
          %1242 = vset.pattern.permute.xlu0 0
          %1243 = vperm.xlu0 %1242, %v1170
          %v1244 = vpop.permute.xlu0 %1243
          %1245 = vset.pattern.permute.xlu0 0
          %1246 = vperm.xlu0 %1245, %v1171
          %v1247 = vpop.permute.xlu0 %1246
          %1248 = vset.pattern.permute.xlu0 0
          %1249 = vperm.xlu0 %1248, %v1172
          %v1250 = vpop.permute.xlu0 %1249
          %1251 = vset.pattern.permute.xlu0 0
          %1252 = vperm.xlu0 %1251, %v1173
          %v1253 = vpop.permute.xlu0 %1252
          %1254 = vset.pattern.permute.xlu0 0
          %1255 = vperm.xlu0 %1254, %v1174
          %v1256 = vpop.permute.xlu0 %1255
          %1257 = vset.pattern.permute.xlu0 0
          %1258 = vperm.xlu0 %1257, %v1175
          %v1259 = vpop.permute.xlu0 %1258
          %1260 = vset.pattern.permute.xlu0 0
          %1261 = vperm.xlu0 %1260, %v1176
          %v1262 = vpop.permute.xlu0 %1261
          %1263 = vset.pattern.permute.xlu0 0
          %1264 = vperm.xlu0 %1263, %v1177
          %v1265 = vpop.permute.xlu0 %1264
          %1266 = vset.pattern.permute.xlu0 0
          %1267 = vperm.xlu0 %1266, %v1178
          %v1268 = vpop.permute.xlu0 %1267
          %1269 = vset.pattern.permute.xlu0 0
          %1270 = vperm.xlu0 %1269, %v1179
          %v1271 = vpop.permute.xlu0 %1270
          %1272 = vset.pattern.permute.xlu0 0
          %1273 = vperm.xlu0 %1272, %v1180
          %v1274 = vpop.permute.xlu0 %1273
          %1275 = vset.pattern.permute.xlu0 0
          %1276 = vperm.xlu0 %1275, %v1181
          %v1277 = vpop.permute.xlu0 %1276
          %1278 = vset.pattern.permute.xlu0 0
          %1279 = vperm.xlu0 %1278, %v1182
          %v1280 = vpop.permute.xlu0 %1279
          %1281 = vset.pattern.permute.xlu0 0
          %1282 = vperm.xlu0 %1281, %v1183
          %v1283 = vpop.permute.xlu0 %1282
          %1284 = vset.pattern.permute.xlu0 0
          %1285 = vperm.xlu0 %1284, %v1184
          %v1286 = vpop.permute.xlu0 %1285
          %1287 = vset.pattern.permute.xlu0 0
          %1288 = vperm.xlu0 %1287, %v1185
          %v1289 = vpop.permute.xlu0 %1288
          %1290 = vset.pattern.permute.xlu0 0
          %1291 = vperm.xlu0 %1290, %v1186
          %v1292 = vpop.permute.xlu0 %1291
          %1293 = vset.pattern.permute.xlu0 0
          %1294 = vperm.xlu0 %1293, %v1187
          %v1295 = vpop.permute.xlu0 %1294
          %1296 = vset.pattern.permute.xlu0 0
          %1297 = vperm.xlu0 %1296, %v1188
          %v1298 = vpop.permute.xlu0 %1297
          %1299 = vset.pattern.permute.xlu0 0
          %1300 = vperm.xlu0 %1299, %v1189
          %v1301 = vpop.permute.xlu0 %1300
          %1302 = vset.pattern.permute.xlu0 0
          %1303 = vperm.xlu0 %1302, %v1190
          %v1304 = vpop.permute.xlu0 %1303
          %1305 = vset.pattern.permute.xlu0 0
          %1306 = vperm.xlu0 %1305, %v1191
          %v1307 = vpop.permute.xlu0 %1306
          %1308 = vset.pattern.permute.xlu0 0
          %1309 = vperm.xlu0 %1308, %v1192
          %v1310 = vpop.permute.xlu0 %1309
          %1311 = vset.pattern.permute.xlu0 0
          %1312 = vperm.xlu0 %1311, %v1193
          %v1313 = vpop.permute.xlu0 %1312
          %1314 = vset.pattern.permute.xlu0 0
          %1315 = vperm.xlu0 %1314, %v1194
          %v1316 = vpop.permute.xlu0 %1315
          %1317 = vset.pattern.permute.xlu0 0
          %1318 = vperm.xlu0 %1317, %v1195
          %v1319 = vpop.permute.xlu0 %1318
          %1320 = vset.pattern.permute.xlu0 0
          %1321 = vperm.xlu0 %1320, %v1196
          %v1322 = vpop.permute.xlu0 %1321
          %1323 = vset.pattern.permute.xlu0 0
          %1324 = vperm.xlu0 %1323, %v1197
          %v1325 = vpop.permute.xlu0 %1324
          %v1326 = vlaneseq
          %v1327 = vshrl.u32 %v1326, 7
          %v1328 = vsub.s32 %v959, %v1327
          %v1329 = vrot.slane %v1232, %v1328
          %v1330 = vlaneseq
          %v1331 = vshrl.u32 %v1330, 7
          %v1332 = vsub.s32 %v964, %v1331
          %v1333 = vrot.slane %v1235, %v1332
          %v1334 = vsel %vm969, %v1333, %v1329
          %v1335 = vlaneseq
          %v1336 = vshrl.u32 %v1335, 7
          %v1337 = vsub.s32 %v971, %v1336
          %v1338 = vrot.slane %v1238, %v1337
          %v1339 = vsel %vm976, %v1338, %v1334
          %v1340 = vlaneseq
          %v1341 = vshrl.u32 %v1340, 7
          %v1342 = vsub.s32 %v978, %v1341
          %v1343 = vrot.slane %v1241, %v1342
          %v1344 = vsel %vm983, %v1343, %v1339
          %v1345 = vlaneseq
          %v1346 = vshrl.u32 %v1345, 7
          %v1347 = vsub.s32 %v985, %v1346
          %v1348 = vrot.slane %v1244, %v1347
          %v1349 = vsel %vm990, %v1348, %v1344
          %v1350 = vlaneseq
          %v1351 = vshrl.u32 %v1350, 7
          %v1352 = vsub.s32 %v992, %v1351
          %v1353 = vrot.slane %v1247, %v1352
          %v1354 = vsel %vm997, %v1353, %v1349
          %v1355 = vlaneseq
          %v1356 = vshrl.u32 %v1355, 7
          %v1357 = vsub.s32 %v999, %v1356
          %v1358 = vrot.slane %v1250, %v1357
          %v1359 = vsel %vm1004, %v1358, %v1354
          %v1360 = vlaneseq
          %v1361 = vshrl.u32 %v1360, 7
          %v1362 = vsub.s32 %v1006, %v1361
          %v1363 = vrot.slane %v1253, %v1362
          %v1364 = vsel %vm1011, %v1363, %v1359
          %v1365 = vlaneseq
          %v1366 = vshrl.u32 %v1365, 7
          %v1367 = vsub.s32 %v1013, %v1366
          %v1368 = vrot.slane %v1256, %v1367
          %v1369 = vsel %vm1018, %v1368, %v1364
          %v1370 = vlaneseq
          %v1371 = vshrl.u32 %v1370, 7
          %v1372 = vsub.s32 %v1020, %v1371
          %v1373 = vrot.slane %v1259, %v1372
          %v1374 = vsel %vm1025, %v1373, %v1369
          %v1375 = vlaneseq
          %v1376 = vshrl.u32 %v1375, 7
          %v1377 = vsub.s32 %v1027, %v1376
          %v1378 = vrot.slane %v1262, %v1377
          %v1379 = vsel %vm1032, %v1378, %v1374
          %v1380 = vlaneseq
          %v1381 = vshrl.u32 %v1380, 7
          %v1382 = vsub.s32 %v1034, %v1381
          %v1383 = vrot.slane %v1265, %v1382
          %v1384 = vsel %vm1039, %v1383, %v1379
          %v1385 = vlaneseq
          %v1386 = vshrl.u32 %v1385, 7
          %v1387 = vsub.s32 %v1041, %v1386
          %v1388 = vrot.slane %v1268, %v1387
          %v1389 = vsel %vm1046, %v1388, %v1384
          %v1390 = vlaneseq
          %v1391 = vshrl.u32 %v1390, 7
          %v1392 = vsub.s32 %v1048, %v1391
          %v1393 = vrot.slane %v1271, %v1392
          %v1394 = vsel %vm1053, %v1393, %v1389
          %v1395 = vlaneseq
          %v1396 = vshrl.u32 %v1395, 7
          %v1397 = vsub.s32 %v1055, %v1396
          %v1398 = vrot.slane %v1274, %v1397
          %v1399 = vsel %vm1060, %v1398, %v1394
          %v1400 = vlaneseq
          %v1401 = vshrl.u32 %v1400, 7
          %v1402 = vsub.s32 %v1062, %v1401
          %v1403 = vrot.slane %v1277, %v1402
          %v1404 = vsel %vm1067, %v1403, %v1399
          %v1405 = vlaneseq
          %v1406 = vshrl.u32 %v1405, 7
          %v1407 = vsub.s32 %v959, %v1406
          %v1408 = vrot.slane %v1280, %v1407
          %v1409 = vlaneseq
          %v1410 = vshrl.u32 %v1409, 7
          %v1411 = vsub.s32 %v964, %v1410
          %v1412 = vrot.slane %v1283, %v1411
          %v1413 = vsel %vm969, %v1412, %v1408
          %v1414 = vlaneseq
          %v1415 = vshrl.u32 %v1414, 7
          %v1416 = vsub.s32 %v971, %v1415
          %v1417 = vrot.slane %v1286, %v1416
          %v1418 = vsel %vm976, %v1417, %v1413
          %v1419 = vlaneseq
          %v1420 = vshrl.u32 %v1419, 7
          %v1421 = vsub.s32 %v978, %v1420
          %v1422 = vrot.slane %v1289, %v1421
          %v1423 = vsel %vm983, %v1422, %v1418
          %v1424 = vlaneseq
          %v1425 = vshrl.u32 %v1424, 7
          %v1426 = vsub.s32 %v985, %v1425
          %v1427 = vrot.slane %v1292, %v1426
          %v1428 = vsel %vm990, %v1427, %v1423
          %v1429 = vlaneseq
          %v1430 = vshrl.u32 %v1429, 7
          %v1431 = vsub.s32 %v992, %v1430
          %v1432 = vrot.slane %v1295, %v1431
          %v1433 = vsel %vm997, %v1432, %v1428
          %v1434 = vlaneseq
          %v1435 = vshrl.u32 %v1434, 7
          %v1436 = vsub.s32 %v999, %v1435
          %v1437 = vrot.slane %v1298, %v1436
          %v1438 = vsel %vm1004, %v1437, %v1433
          %v1439 = vlaneseq
          %v1440 = vshrl.u32 %v1439, 7
          %v1441 = vsub.s32 %v1006, %v1440
          %v1442 = vrot.slane %v1301, %v1441
          %v1443 = vsel %vm1011, %v1442, %v1438
          %v1444 = vlaneseq
          %v1445 = vshrl.u32 %v1444, 7
          %v1446 = vsub.s32 %v1013, %v1445
          %v1447 = vrot.slane %v1304, %v1446
          %v1448 = vsel %vm1018, %v1447, %v1443
          %v1449 = vlaneseq
          %v1450 = vshrl.u32 %v1449, 7
          %v1451 = vsub.s32 %v1020, %v1450
          %v1452 = vrot.slane %v1307, %v1451
          %v1453 = vsel %vm1025, %v1452, %v1448
          %v1454 = vlaneseq
          %v1455 = vshrl.u32 %v1454, 7
          %v1456 = vsub.s32 %v1027, %v1455
          %v1457 = vrot.slane %v1310, %v1456
          %v1458 = vsel %vm1032, %v1457, %v1453
          %v1459 = vlaneseq
          %v1460 = vshrl.u32 %v1459, 7
          %v1461 = vsub.s32 %v1034, %v1460
          %v1462 = vrot.slane %v1313, %v1461
          %v1463 = vsel %vm1039, %v1462, %v1458
          %v1464 = vlaneseq
          %v1465 = vshrl.u32 %v1464, 7
          %v1466 = vsub.s32 %v1041, %v1465
          %v1467 = vrot.slane %v1316, %v1466
          %v1468 = vsel %vm1046, %v1467, %v1463
          %v1469 = vlaneseq
          %v1470 = vshrl.u32 %v1469, 7
          %v1471 = vsub.s32 %v1048, %v1470
          %v1472 = vrot.slane %v1319, %v1471
          %v1473 = vsel %vm1053, %v1472, %v1468
          %v1474 = vlaneseq
          %v1475 = vshrl.u32 %v1474, 7
          %v1476 = vsub.s32 %v1055, %v1475
          %v1477 = vrot.slane %v1322, %v1476
          %v1478 = vsel %vm1060, %v1477, %v1473
          %v1479 = vlaneseq
          %v1480 = vshrl.u32 %v1479, 7
          %v1481 = vsub.s32 %v1062, %v1480
          %v1482 = vrot.slane %v1325, %v1481
          %v1483 = vsel %vm1067, %v1482, %v1478
          %v1484 = vsel %vm330, %v1483, %v1404
          %1486 = vst [vmem:[#allocation8] sm:$0x3] %v1484
          %v1487 = vrsqrt.pop %v1153
          %v1488 = vmul.f32 %v1153, %v1487
          %vm1489 = vcmp.eq.f32.partialorder %v1153, inf
          %v1490 = vsel %vm1489, %v1153, %v1488
          %vm1491 = vcmp.eq.f32.partialorder %v1153, 0.0
          %v1492 = vand.u32 %v1153, 2147483648
          %v1493 = vsel %vm1491, %v1492, %v1490
          %vm1494 = vcmask 1024
          %1495 = vst.msk [vmem:[%s249] sm:$0x3] %vm1494, %v1493
        $region44: #{tpu_custom_call.1} parent=27 // pred_fallthru
          _
        %p1496 = scmp.lt.s32.totalorder %s24, 0
        %s1497 = scalar_select %p1496, %s24, 0
        %s1498 = smul.addr %s1497, 2
        %s1499 = scalar_lea.vmem %s3, %s1498
        // Predicated region
        $region45: #{tpu_custom_call.1} parent=27 // pred_check
          %p1500 = pneg %p99
        $region46: #{tpu_custom_call.1} parent=27 // pred_check_branch
          %1502 = sbr.rel (%p1500) target = $region48
        $region47: #{tpu_custom_call.1} parent=27 // pred_region
          %s1504 = ssub.s32 32, 32
          %1505 = vsyncadd [#allocation5], %s1504
          %s1506 = smul.addr %s24, 32
          %s1507 = scalar_lea.hbm %s2, %s1506
          %s1509 = sshll.u32 [#allocation8], 4
          %s1510 = int_to_ptr.vmem [resolvable:$true] %s1509
          %1512 = dma.vmem_to_hbm [thread:$0]  %s1510, 32, %s1507, [#allocation5]
        $region48: #{tpu_custom_call.1} parent=27 // pred_fallthru
          _
        // Predicated region
        $region49: #{tpu_custom_call.1} parent=27 // pred_check
          %p1513 = pneg %p125
        $region50: #{tpu_custom_call.1} parent=27 // pred_check_branch
          %1515 = sbr.rel (%p1513) target = $region52
        $region51: #{tpu_custom_call.1} parent=27 // pred_region
          _
        $region52: #{tpu_custom_call.1} parent=27 // pred_fallthru
          _
        // Predicated region
        $region53: #{tpu_custom_call.1} parent=27 // pred_check
          %p1516 = pneg %p99
        $region54: #{tpu_custom_call.1} parent=27 // pred_check_branch
          %1518 = sbr.rel (%p1516) target = $region56
        $region55: #{tpu_custom_call.1} parent=27 // pred_region
          %1519 = dma.done [#allocation5], 32
        $region56: #{tpu_custom_call.1} parent=27 // pred_fallthru
          _
        // Predicated region
        $region57: #{tpu_custom_call.1} parent=27 // pred_check
          %p1520 = pneg %p125
        $region58: #{tpu_custom_call.1} parent=27 // pred_check_branch
          %1522 = sbr.rel (%p1520) target = $region60
        $region59: #{tpu_custom_call.1} parent=27 // pred_region
          %p1523 = scmp.lt.s32.totalorder %s24, 0
          %s1524 = scalar_select %p1523, %s24, 0
          %s1525 = smul.addr %s1524, 2
          %s1526 = scalar_lea.vmem %s3, %s1525
        $region60: #{tpu_custom_call.1} parent=27 // pred_fallthru
          _
      $region28: #{tpu_custom_call.1} parent=5 // pred_fallthru
        _
      %p1527 = scmp.le.s32.totalorder 2, %s15
      // Predicated region
      $region61: #{tpu_custom_call.1} parent=5 // pred_check
        %p1528 = pneg %p1527
      $region62: #{tpu_custom_call.1} parent=5 // pred_check_branch
        %1530 = sbr.rel (%p1528) target = $region64
      $region63: #{tpu_custom_call.1} parent=5 // pred_region
        %s1531 = ssub.s32 %s15, 2
      $region64: #{tpu_custom_call.1} parent=5 // pred_fallthru
        _
    $region6: #{tpu_custom_call.1} parent=1 // loop_footer
      %s19 = sadd.s32 1, %s15
    $region7: #{tpu_custom_call.1} parent=1 // loop_footer_branch
      %14 = sbr.rel target = $region3
    $region8: #{tpu_custom_call.1} parent=1 // loop_exit
      _
    %1532 = vsyncpa [#allocation4], 1
    %s1533 = scalar_lea.sflag [#allocation4], 1
    %1534 = vsyncpa %s1533, 1
    %1535 = vsyncpa [#allocation7], 1
    %1536 = vsyncpa [#allocation5], 1
    %s1537 = scalar_lea.sflag [#allocation5], 1
    %1538 = vsyncpa %s1537, 1

</llo_original>
